<compile_context>
chip_gen: v5e
topology: v5e:2x2
jax: 0.10.0
libtpu: 0.0.40
codegen_flags: <defaults>
</compile_context>

<pallas_src>
import functools

import jax
import jax.numpy as jnp
from jax import lax
from jax.experimental import pallas as pl
from jax.experimental.pallas import tpu as pltpu


def _round_up(n, m):
    return ((n + m - 1) // m) * m


def _cdiv(a, b):
    return -(-a // b)


def _orthogonal(key, rows, cols, gain=1.0, dtype=jnp.float32):
    """Deterministic orthogonal init (same spirit as nn.init.orthogonal_)."""
    n, m = max(rows, cols), min(rows, cols)
    a = jax.random.normal(key, (n, m), dtype=jnp.float32)
    q, r = jnp.linalg.qr(a)
    d = jnp.sign(jnp.diagonal(r))        # sign correction -> unique decomposition
    q = q * d[None, :]
    if rows < cols:
        q = q.T
    return (gain * q[:rows, :cols]).astype(dtype)


def init_critic_params(key, num_inputs, hidden_size, dtype=jnp.float32):
    """Weights in PyTorch-native [out, in] layout; biases as column vectors."""
    k1, k2, k3 = jax.random.split(key, 3)
    w1 = _orthogonal(k1, hidden_size, num_inputs, dtype=dtype)    # [H, F]
    w2 = _orthogonal(k2, hidden_size, hidden_size, dtype=dtype)   # [H, H]
    w3 = _orthogonal(k3, 1, hidden_size, dtype=dtype)             # [1, H]
    b1 = jnp.zeros((hidden_size, 1), dtype)
    b2 = jnp.zeros((hidden_size, 1), dtype)
    b3 = jnp.zeros((1, 1), dtype)
    return dict(w1=w1, b1=b1, w2=w2, b2=b2, w3=w3, b3=b3)


def _critic_kernel(x_ref, w1_ref, b1_ref, w2_ref, b2_ref, w3_ref, b3_ref,
                   out_ref):
    """One batch tile: x (TB, F) -> value (1, TB), batch kept in lanes."""
    cd = w1_ref.dtype                      # compute dtype (fp32 or bf16 weights)
    x = x_ref[...].astype(cd)              # no-op when dtypes already match

    # fc1: (H, F) . (TB, F) contracted over F -> (H, TB); bias/ReLU in fp32.
    h = lax.dot_general(w1_ref[...], x, (((1,), (1,)), ((), ())),
                        preferred_element_type=jnp.float32)
    h = jnp.maximum(h + b1_ref[...], 0.0)                       # (H, TB) fp32

    # fc2: (H, H) . (H, TB) -> (H, TB)
    h = lax.dot_general(w2_ref[...], h.astype(cd), (((1,), (0,)), ((), ())),
                        preferred_element_type=jnp.float32)
    h = jnp.maximum(h + b2_ref[...], 0.0)                       # (H, TB) fp32

    # fc3 (value head): (1, H) . (H, TB) -> (1, TB)  -- lane-dense output slab.
    v = lax.dot_general(w3_ref[...], h.astype(cd), (((1,), (0,)), ((), ())),
                        preferred_element_type=jnp.float32)
    out_ref[...] = (v + b3_ref[...]).astype(out_ref.dtype)


def _pick_tile(B, block_b):
    """Rows-per-tile: multiple of 128, <= block_b, >=2 grid steps when useful."""
    block_b = max(128, _round_up(block_b, 128))
    n128 = _cdiv(B, 128)               # 128-row blocks after minimal padding
    max_m = block_b // 128
    if n128 <= 1:
        m = 1                          # tiny batch: single 128-row tile
    elif n128 <= 2 * max_m:
        m = _cdiv(n128, 2)             # moderate batch: exactly 2 grid steps
    else:
        m = max_m                      # large batch: full-size tiles
    return 128 * m


@functools.partial(jax.jit, static_argnames=("block_b", "use_bf16"))
def critic_forward(x, params, *, block_b=2048, use_bf16=False):
    """x: [B, num_inputs] -> value: [B, 1]."""
    B, F = x.shape

    tb = _pick_tile(B, block_b)
    bp = _round_up(B, tb)
    if bp != B:
        x = jnp.pad(x, ((0, bp - B), (0, 0)))   # padded rows sliced off below
    grid = (bp // tb,)

    # One-time weight cast in the wrapper (NOT per grid step inside the kernel).
    wdt = jnp.bfloat16 if use_bf16 else jnp.float32
    w1 = params["w1"].astype(wdt)
    w2 = params["w2"].astype(wdt)
    w3 = params["w3"].astype(wdt)
    b1, b2, b3 = params["b1"], params["b2"], params["b3"]   # biases stay fp32

    # Weights/biases: full-array blocks with a constant index_map -> VMEM
    # resident across all grid steps (no re-DMA).
    resident = lambda a: pl.BlockSpec(a.shape, lambda i: (0, 0))

    out = pl.pallas_call(
        _critic_kernel,
        out_shape=jax.ShapeDtypeStruct((1, bp), x.dtype),
        grid=grid,
        in_specs=[
            pl.BlockSpec((tb, F), lambda i: (i, 0)),    # x tile (streamed)
            resident(w1), resident(b1),
            resident(w2), resident(b2),
            resident(w3), resident(b3),
        ],
        out_specs=pl.BlockSpec((1, tb), lambda i: (0, i)),   # lane-dense slab
        compiler_params=pltpu.CompilerParams(
            dimension_semantics=("parallel",),           # megacore on v7x
            vmem_limit_bytes=32 * 1024 * 1024,
        ),
    )(x, w1, b1, w2, b2, w3, b3)

    return out[0, :B].reshape(B, 1)


def critic_forward_ref_fp32(x, params):
    """Full-fp32 reference (PyTorch module semantics)."""
    h = jnp.maximum(x @ params["w1"].T + params["b1"].T, 0.0)
    h = jnp.maximum(h @ params["w2"].T + params["b2"].T, 0.0)
    return h @ params["w3"].T + params["b3"].T


def critic_forward_ref(x, params, use_bf16=False):
    """Pure-JAX reference mirroring the kernel math (optional bf16 MXU inputs)."""
    cd = jnp.bfloat16 if use_bf16 else jnp.float32
    c = lambda a: a.astype(cd)
    h = lax.dot_general(c(params["w1"]), c(x), (((1,), (1,)), ((), ())),
                        preferred_element_type=jnp.float32)
    h = jnp.maximum(h + params["b1"], 0.0)
    h = lax.dot_general(c(params["w2"]), c(h), (((1,), (0,)), ((), ())),
                        preferred_element_type=jnp.float32)
    h = jnp.maximum(h + params["b2"], 0.0)
    v = lax.dot_general(c(params["w3"]), c(h), (((1,), (0,)), ((), ())),
                        preferred_element_type=jnp.float32)
    return (v + params["b3"]).T


if __name__ == "__main__":
    key = jax.random.PRNGKey(0)
    k_param, k_x1, k_x2 = jax.random.split(key, 3)

    num_inputs = 16
    hidden_size = 32
    params = init_critic_params(k_param, num_inputs, hidden_size)

    # Small batch: single 128-row tile (8 real rows + padding).
    x_small = jax.random.normal(k_x1, (8, num_inputs), dtype=jnp.float32)
    v_small = critic_forward(x_small, params)
    jax.block_until_ready(v_small)
    assert v_small.shape == (8, 1)
    assert jnp.allclose(v_small, critic_forward_ref_fp32(x_small, params),
                        atol=2e-3, rtol=2e-3)

    # Larger batch: B=300 -> tb=256, grid=(2,), 212 padded rows sliced off.
    x_big = jax.random.normal(k_x2, (300, num_inputs), dtype=jnp.float32)
    v_big = critic_forward(x_big, params)
    jax.block_until_ready(v_big)
    assert v_big.shape == (300, 1)
    assert jnp.allclose(v_big, critic_forward_ref_fp32(x_big, params),
                        atol=2e-3, rtol=2e-3)

    # Opt-in bf16 MXU path (weights cast once in the wrapper).
    v_bf16 = critic_forward(x_big, params, use_bf16=True)
    jax.block_until_ready(v_bf16)
    assert v_bf16.shape == (300, 1)
    assert jnp.allclose(v_bf16, critic_forward_ref(x_big, params, use_bf16=True),
                        atol=2e-2, rtol=2e-2)
    assert jnp.allclose(v_bf16, critic_forward_ref_fp32(x_big, params),
                        atol=5e-2, rtol=5e-2)

    print("KERNEL_OK")
</pallas_src>

<mosaic_0001>
module attributes {stable_mosaic.version = 11 : i64} {
  func.func @_critic_kernel(%arg0: i32, %arg1: memref<128x16xf32, #tpu.memory_space<vmem>>, %arg2: memref<32x16xf32, #tpu.memory_space<vmem>>, %arg3: memref<32x1xf32, #tpu.memory_space<vmem>>, %arg4: memref<32x32xf32, #tpu.memory_space<vmem>>, %arg5: memref<32x1xf32, #tpu.memory_space<vmem>>, %arg6: memref<1x32xf32, #tpu.memory_space<vmem>>, %arg7: memref<1x1xf32, #tpu.memory_space<vmem>>, %arg8: memref<1x128xf32, #tpu.memory_space<vmem>>) attributes {dimension_semantics = [#tpu.dimension_semantics<parallel>], iteration_bounds = array<i64: 1>, scalar_prefetch = 0 : i64, scratch_operands = 0 : i64, tpu.core_type = #tpu.core_type<tc>, window_params = [{transform_indices = @transform_0, window_bounds = array<i64: 128, 16>}, {pipeline_mode = #tpu.pipeline_mode<synchronous>, transform_indices = @transform_1, window_bounds = array<i64: 32, 16>}, {pipeline_mode = #tpu.pipeline_mode<synchronous>, transform_indices = @transform_2, window_bounds = array<i64: 32, 1>}, {pipeline_mode = #tpu.pipeline_mode<synchronous>, transform_indices = @transform_3, window_bounds = array<i64: 32, 32>}, {pipeline_mode = #tpu.pipeline_mode<synchronous>, transform_indices = @transform_4, window_bounds = array<i64: 32, 1>}, {pipeline_mode = #tpu.pipeline_mode<synchronous>, transform_indices = @transform_5, window_bounds = array<i64: 1, 32>}, {pipeline_mode = #tpu.pipeline_mode<synchronous>, transform_indices = @transform_6, window_bounds = array<i64: 1, 1>}, {transform_indices = @transform_7, window_bounds = array<i64: 1, 128>}]} {
    %c0 = arith.constant 0 : index
    %c0_0 = arith.constant 0 : index
    %0 = vector.load %arg1[%c0, %c0_0] : memref<128x16xf32, #tpu.memory_space<vmem>>, vector<128x16xf32>
    %c0_1 = arith.constant 0 : index
    %c0_2 = arith.constant 0 : index
    %1 = vector.load %arg2[%c0_1, %c0_2] : memref<32x16xf32, #tpu.memory_space<vmem>>, vector<32x16xf32>
    %cst = arith.constant dense<0.000000e+00> : vector<32x128xf32>
    %2 = tpu.matmul %1, %0, %cst {dimension_numbers = #tpu.dot_dimension_numbers<[1], [1], [0], [0], [0, 0, 1, 0], [], []>} : vector<32x16xf32>, vector<128x16xf32>, vector<32x128xf32> -> vector<32x128xf32>
    %c0_3 = arith.constant 0 : index
    %c0_4 = arith.constant 0 : index
    %3 = vector.load %arg3[%c0_3, %c0_4] : memref<32x1xf32, #tpu.memory_space<vmem>>, vector<32x1xf32>
    %4 = vector.broadcast %3 : vector<32x1xf32> to vector<32x128xf32>
    %5 = arith.addf %2, %4 : vector<32x128xf32>
    %cst_5 = arith.constant 0.000000e+00 : f32
    %6 = vector.broadcast %cst_5 : f32 to vector<32x128xf32>
    %7 = arith.maximumf %5, %6 : vector<32x128xf32>
    %c0_6 = arith.constant 0 : index
    %c0_7 = arith.constant 0 : index
    %8 = vector.load %arg4[%c0_6, %c0_7] : memref<32x32xf32, #tpu.memory_space<vmem>>, vector<32x32xf32>
    %cst_8 = arith.constant dense<0.000000e+00> : vector<32x128xf32>
    %9 = tpu.matmul %8, %7, %cst_8 {dimension_numbers = #tpu.dot_dimension_numbers<[1], [0], [0], [1], [0, 0, 1, 1], [], []>} : vector<32x32xf32>, vector<32x128xf32>, vector<32x128xf32> -> vector<32x128xf32>
    %c0_9 = arith.constant 0 : index
    %c0_10 = arith.constant 0 : index
    %10 = vector.load %arg5[%c0_9, %c0_10] : memref<32x1xf32, #tpu.memory_space<vmem>>, vector<32x1xf32>
    %11 = vector.broadcast %10 : vector<32x1xf32> to vector<32x128xf32>
    %12 = arith.addf %9, %11 : vector<32x128xf32>
    %cst_11 = arith.constant 0.000000e+00 : f32
    %13 = vector.broadcast %cst_11 : f32 to vector<32x128xf32>
    %14 = arith.maximumf %12, %13 : vector<32x128xf32>
    %c0_12 = arith.constant 0 : index
    %c0_13 = arith.constant 0 : index
    %15 = vector.load %arg6[%c0_12, %c0_13] : memref<1x32xf32, #tpu.memory_space<vmem>>, vector<1x32xf32>
    %cst_14 = arith.constant dense<0.000000e+00> : vector<1x128xf32>
    %16 = tpu.matmul %15, %14, %cst_14 {dimension_numbers = #tpu.dot_dimension_numbers<[1], [0], [0], [1], [0, 0, 1, 1], [], []>} : vector<1x32xf32>, vector<32x128xf32>, vector<1x128xf32> -> vector<1x128xf32>
    %c0_15 = arith.constant 0 : index
    %c0_16 = arith.constant 0 : index
    %17 = vector.load %arg7[%c0_15, %c0_16] : memref<1x1xf32, #tpu.memory_space<vmem>>, vector<1x1xf32>
    %18 = vector.broadcast %17 : vector<1x1xf32> to vector<1x128xf32>
    %19 = arith.addf %16, %18 : vector<1x128xf32>
    %c0_17 = arith.constant 0 : index
    %c0_18 = arith.constant 0 : index
    %20 = vector.load %arg8[%c0_17, %c0_18] : memref<1x128xf32, #tpu.memory_space<vmem>>, vector<1x128xf32>
    tpu.vector_store %arg8[%c0_17, %c0_18], %19 {strides = array<i32>} : memref<1x128xf32, #tpu.memory_space<vmem>>, vector<1x128xf32>,
    return
  }
  func.func @transform_0(%arg0: i32) -> (i32, i32) {
    %c0_i32 = arith.constant 0 : i32
    %c0_i32_0 = arith.constant 0 : i32
    return %arg0, %c0_i32 : i32, i32
  }
  func.func @transform_1(%arg0: i32) -> (i32, i32) {
    %c0_i32 = arith.constant 0 : i32
    %c0_i32_0 = arith.constant 0 : i32
    %c0_i32_1 = arith.constant 0 : i32
    return %c0_i32, %c0_i32_0 : i32, i32
  }
  func.func @transform_2(%arg0: i32) -> (i32, i32) {
    %c0_i32 = arith.constant 0 : i32
    %c0_i32_0 = arith.constant 0 : i32
    %c0_i32_1 = arith.constant 0 : i32
    return %c0_i32, %c0_i32_0 : i32, i32
  }
  func.func @transform_3(%arg0: i32) -> (i32, i32) {
    %c0_i32 = arith.constant 0 : i32
    %c0_i32_0 = arith.constant 0 : i32
    %c0_i32_1 = arith.constant 0 : i32
    return %c0_i32, %c0_i32_0 : i32, i32
  }
  func.func @transform_4(%arg0: i32) -> (i32, i32) {
    %c0_i32 = arith.constant 0 : i32
    %c0_i32_0 = arith.constant 0 : i32
    %c0_i32_1 = arith.constant 0 : i32
    return %c0_i32, %c0_i32_0 : i32, i32
  }
  func.func @transform_5(%arg0: i32) -> (i32, i32) {
    %c0_i32 = arith.constant 0 : i32
    %c0_i32_0 = arith.constant 0 : i32
    %c0_i32_1 = arith.constant 0 : i32
    return %c0_i32, %c0_i32_0 : i32, i32
  }
  func.func @transform_6(%arg0: i32) -> (i32, i32) {
    %c0_i32 = arith.constant 0 : i32
    %c0_i32_0 = arith.constant 0 : i32
    %c0_i32_1 = arith.constant 0 : i32
    return %c0_i32, %c0_i32_0 : i32, i32
  }
  func.func @transform_7(%arg0: i32) -> (i32, i32) {
    %c0_i32 = arith.constant 0 : i32
    %c0_i32_0 = arith.constant 0 : i32
    return %c0_i32, %arg0 : i32, i32
  }
}

</mosaic_0001>

<llo_original>
// kernel: critic_forward.1
$region0: #{critic_forward.1}
  #allocation0 [shape = 'u32[]', space=smem, size = 0x4, offset = 0x4, fixed_abs, tag = 'smem constant byte address 0x4 - core index']
  #allocation1 [shape = 'u32[72,128]{1,0:T(1,128)}', space=vmem, size = 0x9000, scoped, tag = 'internal scratch']
  #allocation2 [shape = 'f32[1,1]{1,0:T(1,128)S(1)}', space=vmem, size = 0x200, scoped, tag = 'scoped memory for critic_forward.1']
  %s0 = inlined_call_operand.vmem [shape: f32[128,16], index: 0, kind: input, shape index: {}]
  %s1 = inlined_call_operand.vmem [shape: f32[32,16], index: 1, kind: input, shape index: {}]
  %s2 = inlined_call_operand.vmem [shape: f32[32,1], index: 2, kind: input, shape index: {}]
  %s3 = inlined_call_operand.vmem [shape: f32[32,32], index: 3, kind: input, shape index: {}]
  %s4 = inlined_call_operand.vmem [shape: f32[32,1], index: 4, kind: input, shape index: {}]
  %s5 = inlined_call_operand.vmem [shape: f32[1,32], index: 5, kind: input, shape index: {}]
  %s6 = inlined_call_operand.<no memory space> [shape: f32[1,1], index: 6, kind: input, shape index: {}]
  %s7 = inlined_call_operand.vmem [shape: f32[1,128], index: 7, kind: output, shape index: {}]
  %s8 = sld [smem:[#allocation0]]
  $region38: #{critic_forward.1} parent=0
    _
  %s10 = ssub.s32 1, %s8
  %s11 = scalar_select 0, %s10, %s8
  %v12 = vstv %s6
  %13 = vst [vmem:[#allocation2] sm:$0x1] %v12
  // Predicated region
  $region2: #{critic_forward.1} parent=0 // pred_check
    _
  $region3: #{critic_forward.1} parent=0 // pred_check_branch
    %15 = sbr.rel (0) target = $region5
  $region4: #{critic_forward.1} parent=0 // pred_region
    _
  $region5: #{critic_forward.1} parent=0 // pred_fallthru
    _
  // Predicated region
  $region6: #{critic_forward.1} parent=0 // pred_check
    _
  $region7: #{critic_forward.1} parent=0 // pred_check_branch
    %17 = sbr.rel (0) target = $region9
  $region8: #{critic_forward.1} parent=0 // pred_region
    _
  $region9: #{critic_forward.1} parent=0 // pred_fallthru
    _
  // Predicated region
  $region10: #{critic_forward.1} parent=0 // pred_check
    _
  $region11: #{critic_forward.1} parent=0 // pred_check_branch
    %19 = sbr.rel (0) target = $region13
  $region12: #{critic_forward.1} parent=0 // pred_region
    _
  $region13: #{critic_forward.1} parent=0 // pred_fallthru
    _
  // Predicated region
  $region14: #{critic_forward.1} parent=0 // pred_check
    _
  $region15: #{critic_forward.1} parent=0 // pred_check_branch
    %21 = sbr.rel (0) target = $region17
  $region16: #{critic_forward.1} parent=0 // pred_region
    _
  $region17: #{critic_forward.1} parent=0 // pred_fallthru
    _
  // Predicated region
  $region18: #{critic_forward.1} parent=0 // pred_check
    _
  $region19: #{critic_forward.1} parent=0 // pred_check_branch
    %23 = sbr.rel (0) target = $region21
  $region20: #{critic_forward.1} parent=0 // pred_region
    _
  $region21: #{critic_forward.1} parent=0 // pred_fallthru
    _
  // Predicated region
  $region22: #{critic_forward.1} parent=0 // pred_check
    _
  $region23: #{critic_forward.1} parent=0 // pred_check_branch
    %25 = sbr.rel (0) target = $region25
  $region24: #{critic_forward.1} parent=0 // pred_region
    _
  $region25: #{critic_forward.1} parent=0 // pred_fallthru
    _
  // Predicated region
  $region26: #{critic_forward.1} parent=0 // pred_check
    _
  $region27: #{critic_forward.1} parent=0 // pred_check_branch
    %27 = sbr.rel (0) target = $region29
  $region28: #{critic_forward.1} parent=0 // pred_region
    _
  $region29: #{critic_forward.1} parent=0 // pred_fallthru
    _
  %v28 = vld [vmem:[%s0] sm:$0xff]
  %v29 = vld [vmem:[%s0 + $0x8] sm:$0xff]
  %v30 = vld [vmem:[%s0 + $0x10] sm:$0xff]
  %v31 = vld [vmem:[%s0 + $0x18] sm:$0xff]
  %v32 = vld [vmem:[%s0 + $0x20] sm:$0xff]
  %v33 = vld [vmem:[%s0 + $0x28] sm:$0xff]
  %v34 = vld [vmem:[%s0 + $0x30] sm:$0xff]
  %v35 = vld [vmem:[%s0 + $0x38] sm:$0xff]
  %v36 = vld [vmem:[%s0 + $0x40] sm:$0xff]
  %v37 = vld [vmem:[%s0 + $0x48] sm:$0xff]
  %v38 = vld [vmem:[%s0 + $0x50] sm:$0xff]
  %v39 = vld [vmem:[%s0 + $0x58] sm:$0xff]
  %v40 = vld [vmem:[%s0 + $0x60] sm:$0xff]
  %v41 = vld [vmem:[%s0 + $0x68] sm:$0xff]
  %v42 = vld [vmem:[%s0 + $0x70] sm:$0xff]
  %v43 = vld [vmem:[%s0 + $0x78] sm:$0xff]
  %v44 = vld [vmem:[%s1] sm:$0xff]
  %v45 = vld [vmem:[%s1 + $0x8] sm:$0xff]
  %v46 = vld [vmem:[%s1 + $0x10] sm:$0xff]
  %v47 = vld [vmem:[%s1 + $0x18] sm:$0xff]
  %v48 = vld [vmem:[%s2] sm:$0xff]
  %v49 = vld [vmem:[%s2 + $0x8] sm:$0xff]
  %v50 = vld [vmem:[%s2 + $0x10] sm:$0xff]
  %v51 = vld [vmem:[%s2 + $0x18] sm:$0xff]
  %53 = vset.pattern.permute.xlu0 0
  %54 = vperm.xlu0 %53, %v48
  %v55 = vpop.permute.xlu0 %54
  %58 = vset.pattern.permute.xlu0 0
  %59 = vperm.xlu0 %58, %v49
  %v60 = vpop.permute.xlu0 %59
  %63 = vset.pattern.permute.xlu0 0
  %64 = vperm.xlu0 %63, %v50
  %v65 = vpop.permute.xlu0 %64
  %68 = vset.pattern.permute.xlu0 0
  %69 = vperm.xlu0 %68, %v51
  %v70 = vpop.permute.xlu0 %69
  %vm72 = vcmask 130048
  %v74 = vsel %vm72, %v44, 0
  %v77 = vsel %vm72, %v45, 0
  %v80 = vsel %vm72, %v46, 0
  %v83 = vsel %vm72, %v47, 0
  %v86 = vsel %vm72, %v28, 0
  %v89 = vsel %vm72, %v29, 0
  %v92 = vsel %vm72, %v30, 0
  %v95 = vsel %vm72, %v31, 0
  %v98 = vsel %vm72, %v32, 0
  %v101 = vsel %vm72, %v33, 0
  %v104 = vsel %vm72, %v34, 0
  %v107 = vsel %vm72, %v35, 0
  %v110 = vsel %vm72, %v36, 0
  %v113 = vsel %vm72, %v37, 0
  %v116 = vsel %vm72, %v38, 0
  %v119 = vsel %vm72, %v39, 0
  %v122 = vsel %vm72, %v40, 0
  %v125 = vsel %vm72, %v41, 0
  %v128 = vsel %vm72, %v42, 0
  %v131 = vsel %vm72, %v43, 0
  %133 = vmatpush.xpose.msra.mxu0 %v131
  %134 = vmatpush.xpose.msra.mxu0 %v128
  %135 = vmatpush.xpose.msra.mxu0 %v125
  %136 = vmatpush.xpose.msra.mxu0 %v122
  %137 = vmatpush.xpose.msra.mxu0 %v119
  %138 = vmatpush.xpose.msra.mxu0 %v116
  %139 = vmatpush.xpose.msra.mxu0 %v113
  %140 = vmatpush.xpose.msra.mxu0 %v110
  %141 = vmatpush.xpose.msra.mxu0 %v107
  %142 = vmatpush.xpose.msra.mxu0 %v104
  %143 = vmatpush.xpose.msra.mxu0 %v101
  %144 = vmatpush.xpose.msra.mxu0 %v98
  %145 = vmatpush.xpose.msra.mxu0 %v95
  %146 = vmatpush.xpose.msra.mxu0 %v92
  %147 = vmatpush.xpose.msra.mxu0 %v89
  %148 = vmatpush.xpose.msra.mxu0 %v86
  %149 = vmatmul.f32.gmra.mxu0 %v74
  %v150 = vpop.f32.mrf.mxu0
  %v151 = vadd.f32 %v55, %v150
  %152 = vmatmul.f32.gmra.mxu0 %v77
  %v153 = vpop.f32.mrf.mxu0
  %v154 = vadd.f32 %v60, %v153
  %155 = vmatmul.f32.gmra.mxu0 %v80
  %v156 = vpop.f32.mrf.mxu0
  %v157 = vadd.f32 %v65, %v156
  %158 = vmatmul.f32.gmra.mxu0 %v83
  %v159 = vpop.f32.mrf.mxu0
  %v160 = vadd.f32 %v70, %v159
  %161 = vdwg.mxu0
  %v162 = vmax.f32 %v151, 0.0
  %v163 = vmax.f32 %v154, 0.0
  %v164 = vmax.f32 %v157, 0.0
  %v165 = vmax.f32 %v160, 0.0
  %v166 = vld [vmem:[%s3] sm:$0xff]
  %v167 = vld [vmem:[%s3 + $0x8] sm:$0xff]
  %v168 = vld [vmem:[%s3 + $0x10] sm:$0xff]
  %v169 = vld [vmem:[%s3 + $0x18] sm:$0xff]
  %v170 = vld [vmem:[%s4] sm:$0xff]
  %v171 = vld [vmem:[%s4 + $0x8] sm:$0xff]
  %v172 = vld [vmem:[%s4 + $0x10] sm:$0xff]
  %v173 = vld [vmem:[%s4 + $0x18] sm:$0xff]
  %175 = vset.pattern.permute.xlu0 0
  %176 = vperm.xlu0 %175, %v170
  %v177 = vpop.permute.xlu0 %176
  %180 = vset.pattern.permute.xlu0 0
  %181 = vperm.xlu0 %180, %v171
  %v182 = vpop.permute.xlu0 %181
  %185 = vset.pattern.permute.xlu0 0
  %186 = vperm.xlu0 %185, %v172
  %v187 = vpop.permute.xlu0 %186
  %190 = vset.pattern.permute.xlu0 0
  %191 = vperm.xlu0 %190, %v173
  %v192 = vpop.permute.xlu0 %191
  %vm194 = vcmask 261120
  %v196 = vsel %vm194, %v166, 0
  %v199 = vsel %vm194, %v167, 0
  %v202 = vsel %vm194, %v168, 0
  %v205 = vsel %vm194, %v169, 0
  %207 = vmatpush.msra.mxu0 0.0
  %208 = vmatpush.msra.mxu0 0.0
  %209 = vmatpush.msra.mxu0 0.0
  %210 = vmatpush.msra.mxu0 0.0
  %211 = vmatpush.msra.mxu0 0.0
  %212 = vmatpush.msra.mxu0 0.0
  %213 = vmatpush.msra.mxu0 0.0
  %214 = vmatpush.msra.mxu0 0.0
  %215 = vmatpush.msra.mxu0 0.0
  %216 = vmatpush.msra.mxu0 0.0
  %217 = vmatpush.msra.mxu0 0.0
  %218 = vmatpush.msra.mxu0 0.0
  %219 = vmatpush.msra.mxu0 %v165
  %220 = vmatpush.msra.mxu0 %v164
  %221 = vmatpush.msra.mxu0 %v163
  %222 = vmatpush.msra.mxu0 %v162
  %223 = vmatmul.f32.gmra.mxu0 %v196
  %v224 = vpop.f32.mrf.mxu0
  %v225 = vadd.f32 %v177, %v224
  %226 = vmatmul.f32.gmra.mxu0 %v199
  %v227 = vpop.f32.mrf.mxu0
  %v228 = vadd.f32 %v182, %v227
  %229 = vmatmul.f32.gmra.mxu0 %v202
  %v230 = vpop.f32.mrf.mxu0
  %v231 = vadd.f32 %v187, %v230
  %232 = vmatmul.f32.gmra.mxu0 %v205
  %v233 = vpop.f32.mrf.mxu0
  %v234 = vadd.f32 %v192, %v233
  %235 = vdwg.mxu0
  %v236 = vmax.f32 %v225, 0.0
  %v237 = vmax.f32 %v228, 0.0
  %v238 = vmax.f32 %v231, 0.0
  %v239 = vmax.f32 %v234, 0.0
  %v240 = vld [vmem:[%s5] sm:$0x1]
  %v241 = vld [vmem:[#allocation2] sm:$0x1]
  %243 = vset.pattern.permute.xlu0 0
  %244 = vperm.xlu0 %243, %v241
  %v245 = vpop.permute.xlu0 %244
  %v247 = vperm.slane %v245, 0
  %v249 = vsel %vm194, %v240, 0
  %251 = vmatpush.msra.mxu0 0.0
  %252 = vmatpush.msra.mxu0 0.0
  %253 = vmatpush.msra.mxu0 0.0
  %254 = vmatpush.msra.mxu0 0.0
  %255 = vmatpush.msra.mxu0 0.0
  %256 = vmatpush.msra.mxu0 0.0
  %257 = vmatpush.msra.mxu0 0.0
  %258 = vmatpush.msra.mxu0 0.0
  %259 = vmatpush.msra.mxu0 0.0
  %260 = vmatpush.msra.mxu0 0.0
  %261 = vmatpush.msra.mxu0 0.0
  %262 = vmatpush.msra.mxu0 0.0
  %263 = vmatpush.msra.mxu0 %v239
  %264 = vmatpush.msra.mxu0 %v238
  %265 = vmatpush.msra.mxu0 %v237
  %266 = vmatpush.msra.mxu0 %v236
  %267 = vmatmul.f32.gmra.mxu0 %v249
  %v268 = vpop.f32.mrf.mxu0
  %v269 = vadd.f32 %v247, %v268
  %270 = vdwg.mxu0
  %271 = vst [vmem:[%s7] sm:$0x1] %v269
  // Predicated region
  $region30: #{critic_forward.1} parent=0 // pred_check
    _
  $region31: #{critic_forward.1} parent=0 // pred_check_branch
    %273 = sbr.rel (0) target = $region33
  $region32: #{critic_forward.1} parent=0 // pred_region
    _
  $region33: #{critic_forward.1} parent=0 // pred_fallthru
    _
  // Predicated region
  $region34: #{critic_forward.1} parent=0 // pred_check
    _
  $region35: #{critic_forward.1} parent=0 // pred_check_branch
    %275 = sbr.rel (0) target = $region37
  $region36: #{critic_forward.1} parent=0 // pred_region
    _
  $region37: #{critic_forward.1} parent=0 // pred_fallthru
    _

</llo_original>
